<compile_context>
chip_gen: v7x
topology: tpu7x:2x2x1
jax: 0.10.0
libtpu: 0.0.40
codegen_flags: <defaults>
</compile_context>

<pallas_src>
import functools

import jax
import jax.numpy as jnp
from jax import lax
from jax.experimental import pallas as pl
from jax.experimental.pallas import tpu as pltpu

EPS = 1e-5  # nn.InstanceNorm2d default


def _round_up(v, m):
    return (v + m - 1) // m * m


def _make_kernel(Hp, Wp, Cin, Cout, K1p, K2p):
    """Kernel for one image. Activations are (C, n_pix) with pixels on lanes."""
    P = Hp * Wp          # number of real output pixels
    G = Wp + 1           # max |flat shift| of a 3x3 tap = one row + one column

    def conv_in_relu6(x_ext, w_ref, col_ref, cin, kp, out_halo):
        """Conv3x3(pad=1) -> InstanceNorm2d -> ReLU6 on a flat (cin, *) activation.

        x_ext:   (cin, n_out + 2*G) zero-halo-padded flat activation (value).
        w_ref:   (Cout, kp) repacked weights, kp = round_up(9*cin, 8).
        col_ref: (kp, n_out) VMEM scratch for the im2col matrix.
        out_halo: extra output columns kept on each side (G for conv #1 so its
                  result is already halo-padded for conv #2; 0 for conv #2).
        """
        n_out = P + 2 * out_halo

        # Per-column masks implementing the left/right zero padding of the conv
        # (constant w.r.t. the data; cheap VPU work hidden under the MXU).
        j = lax.broadcasted_iota(jnp.int32, (1, n_out), 1)
        wcol = (j - out_halo + 2 * Wp) % Wp            # column index w of pixel j
        left_ok = wcol != 0                            # sampling column w-1 is valid
        right_ok = wcol != (Wp - 1)                    # sampling column w+1 is valid

        # --- im2col: build (kp, n_out) once in VMEM, then ONE deep MXU matmul ---
        for dy in range(3):
            for dx in range(3):
                t = dy * 3 + dx
                s = (dy - 1) * Wp + (dx - 1)           # flat shift of this tap
                blk = x_ext[:, s + G: s + G + n_out]   # static lane-offset window
                if dx == 0:
                    blk = jnp.where(left_ok, blk, 0.0)
                elif dx == 2:
                    blk = jnp.where(right_ok, blk, 0.0)
                col_ref[t * cin:(t + 1) * cin, :] = blk
        if kp > 9 * cin:                               # zero the K-padding rows
            col_ref[9 * cin:, :] = jnp.zeros((kp - 9 * cin, n_out), jnp.float32)

        acc = jnp.dot(w_ref[...], col_ref[...],
                      preferred_element_type=jnp.float32)          # (Cout, n_out)

        if out_halo:
            # Halo columns hold junk (they are outside the image); zero them so
            # the statistics and the next conv's windows only see real pixels.
            center = (j >= out_halo) & (j < out_halo + P)
            acc = jnp.where(center, acc, 0.0)

        # InstanceNorm2d (biased variance over the P real pixels), single pass.
        s1 = jnp.sum(acc, axis=1, keepdims=True)
        s2 = jnp.sum(acc * acc, axis=1, keepdims=True)
        mean = s1 * (1.0 / P)
        var = jnp.maximum(s2 * (1.0 / P) - mean * mean, 0.0)
        y = jnp.clip((acc - mean) * lax.rsqrt(var + EPS), 0.0, 6.0)  # ReLU6
        if out_halo:
            y = jnp.where(center, y, 0.0)              # keep the halo exactly zero
        return y

    def kernel(x_ref, w1_ref, w2_ref, o_ref, col1_ref, col2_ref):
        x_ext = x_ref[0]                               # (Cin, P + 4*G)
        # CBR #1: produce a halo-padded result so CBR #2 can slice its windows
        # directly from it (no padded-activation scratch, no concatenates).
        y_ext = conv_in_relu6(x_ext, w1_ref, col1_ref, Cin, K1p, out_halo=G)
        # CBR #2
        z = conv_in_relu6(y_ext, w2_ref, col2_ref, Cout, K2p, out_halo=0)
        o_ref[0] = z                                   # (Cout, P) lane-dense store

    return kernel


@functools.partial(jax.jit, static_argnames=("is_pooling",))
def double_cbr(x_nchw, w1, b1, w2, b2, *, is_pooling=False):
    """x_nchw: (N, Cin, H, W) f32; w: (3,3,Ci,Co) HWIO; b: (1,Co).

    b1/b2 are accepted for interface parity with the torch module but are not
    used: a conv bias is cancelled exactly by the InstanceNorm mean subtraction.
    """
    del b1, b2
    x = x_nchw.astype(jnp.float32)
    N, Cin, H, W = x.shape
    Cout = w1.shape[-1]

    if is_pooling:
        # TODO(synk): 2x2 max-pool decimation along the flattened lane axis has no
        # clean, portable in-kernel lowering; it is done in the XLA producer where
        # it fuses with the reshape and shrinks the kernel's input DMA 4x.
        H, W = H // 2, W // 2                 # floor semantics like nn.MaxPool2d(2)
        x = x[:, :, :2 * H, :2 * W].reshape(N, Cin, H, 2, W, 2).max(axis=(3, 5))

    P = H * W
    G = W + 1
    x_flat = x.reshape(N, Cin, P)             # free: NCHW is already (C, H*W)
    # Zero halo of 2*G pixels on each side so every 3x3 window (including the
    # halo outputs of conv #1) is an in-bounds static lane slice in the kernel.
    x_ext = jnp.pad(x_flat, ((0, 0), (0, 0), (2 * G, 2 * G)))

    def repack(w):
        # HWIO (3,3,ci,co) -> (co, K) with rows ordered (dy, dx, ci); K padded to
        # a multiple of 8.  For VGG-style channel counts K is already 128-friendly.
        kh, kw, ci, co = w.shape
        k = kh * kw * ci
        kp = _round_up(k, 8)
        wm = w.reshape(k, co).astype(jnp.float32).T
        return jnp.pad(wm, ((0, 0), (0, kp - k)))

    w1m = repack(w1)                          # (Cout, K1p)
    w2m = repack(w2)                          # (Cout, K2p)
    K1p, K2p = w1m.shape[1], w2m.shape[1]

    kernel = _make_kernel(H, W, Cin, Cout, K1p, K2p)

    # Advisory cost hint so XLA schedules around the custom call sensibly.
    flops = N * 2 * Cout * (K1p * (P + 2 * G) + K2p * P)
    bytes_accessed = 4 * (x_ext.size + w1m.size + w2m.size + N * Cout * P)
    cost = pl.CostEstimate(flops=flops, transcendentals=2 * N * Cout,
                           bytes_accessed=bytes_accessed)

    out_flat = pl.pallas_call(
        kernel,
        out_shape=jax.ShapeDtypeStruct((N, Cout, P), jnp.float32),
        grid_spec=pltpu.PrefetchScalarGridSpec(
            num_scalar_prefetch=0,
            grid=(N,),                        # for N==1 on v7x, add an H-tile axis
            in_specs=[
                pl.BlockSpec((1, Cin, P + 4 * G), lambda n: (n, 0, 0)),
                pl.BlockSpec((Cout, K1p), lambda n: (0, 0)),   # resident weights
                pl.BlockSpec((Cout, K2p), lambda n: (0, 0)),   # resident weights
            ],
            out_specs=pl.BlockSpec((1, Cout, P), lambda n: (n, 0, 0)),
            scratch_shapes=[
                pltpu.VMEM((K1p, P + 2 * G), jnp.float32),   # im2col for conv #1
                pltpu.VMEM((K2p, P), jnp.float32),           # im2col for conv #2
            ],
        ),
        compiler_params=pltpu.CompilerParams(dimension_semantics=("parallel",)),
        cost_estimate=cost,
    )(x_ext, w1m, w2m)

    return out_flat.reshape(N, Cout, H, W)    # free reshape back to NCHW


def ref_double_cbr(x_nchw, w1, b1, w2, b2, is_pooling):
    """Pure-JAX reference matching the PyTorch forward semantics."""
    x = x_nchw
    if is_pooling:
        N, C, H, W = x.shape
        H, W = H // 2, W // 2
        x = x[:, :, :2 * H, :2 * W].reshape(N, C, H, 2, W, 2).max(axis=(3, 5))

    def conv(x, w, b):
        y = lax.conv_general_dilated(
            x, w, window_strides=(1, 1), padding=((1, 1), (1, 1)),
            dimension_numbers=("NCHW", "HWIO", "NCHW"),
            precision=lax.Precision.HIGHEST)
        return y + b.reshape(1, -1, 1, 1)

    def inorm_relu6(y):
        mean = y.mean(axis=(2, 3), keepdims=True)
        var = ((y - mean) ** 2).mean(axis=(2, 3), keepdims=True)
        return jnp.clip((y - mean) * lax.rsqrt(var + EPS), 0.0, 6.0)

    y = inorm_relu6(conv(x, w1, b1))
    return inorm_relu6(conv(y, w2, b2))


if __name__ == "__main__":
    key = jax.random.PRNGKey(0)
    k1, k2, k3, k4, k5 = jax.random.split(key, 5)

    N, Cin, H, W = 2, 4, 16, 16
    Cout = 8

    x = jax.random.normal(k1, (N, Cin, H, W), jnp.float32)
    # deterministic synthetic parameters (shapes from the module __init__)
    w1 = jax.random.normal(k2, (3, 3, Cin, Cout), jnp.float32) * 0.2
    b1 = jax.random.normal(k3, (1, Cout), jnp.float32) * 0.1
    w2 = jax.random.normal(k4, (3, 3, Cout, Cout), jnp.float32) * 0.2
    b2 = jax.random.normal(k5, (1, Cout), jnp.float32) * 0.1

    for is_pooling in (False, True):
        out = jax.block_until_ready(
            double_cbr(x, w1, b1, w2, b2, is_pooling=is_pooling))
        ref = ref_double_cbr(x, w1, b1, w2, b2, is_pooling)
        assert out.shape == ref.shape, (out.shape, ref.shape)
        if not jnp.allclose(out, ref, atol=1e-3, rtol=1e-3):
            raise AssertionError(
                f"mismatch (is_pooling={is_pooling}): "
                f"max abs err = {jnp.max(jnp.abs(out - ref))}")

    print("KERNEL_OK")
</pallas_src>

<mosaic_0001>
module attributes {stable_mosaic.version = 11 : i64} {
  func.func @kernel(%arg0: i32, %arg1: memref<1x4x324xf32, #tpu.memory_space<vmem>>, %arg2: memref<8x40xf32, #tpu.memory_space<vmem>>, %arg3: memref<8x72xf32, #tpu.memory_space<vmem>>, %arg4: memref<1x8x256xf32, #tpu.memory_space<vmem>>, %arg5: memref<40x290xf32, #tpu.memory_space<vmem>>, %arg6: memref<72x256xf32, #tpu.memory_space<vmem>>) attributes {dimension_semantics = [#tpu.dimension_semantics<parallel>], iteration_bounds = array<i64: 2>, scalar_prefetch = 0 : i64, scratch_operands = 2 : i64, tpu.core_type = #tpu.core_type<tc>, window_params = [{transform_indices = @transform_0, window_bounds = array<i64: 1, 4, 324>}, {pipeline_mode = #tpu.pipeline_mode<synchronous>, transform_indices = @transform_1, window_bounds = array<i64: 8, 40>}, {pipeline_mode = #tpu.pipeline_mode<synchronous>, transform_indices = @transform_2, window_bounds = array<i64: 8, 72>}, {transform_indices = @transform_3, window_bounds = array<i64: 1, 8, 256>}]} {
    %c0 = arith.constant 0 : index
    %c0_0 = arith.constant 0 : index
    %c0_1 = arith.constant 0 : index
    %0 = vector.load %arg1[%c0, %c0_0, %c0_1] : memref<1x4x324xf32, #tpu.memory_space<vmem>>, vector<1x4x324xf32>
    %1 = vector.shape_cast %0 : vector<1x4x324xf32> to vector<4x324xf32>
    %2 = tpu.iota {dimensions = array<i32: 1>} : vector<1x290xi32>
    %c17_i32 = arith.constant 17 : i32
    %3 = vector.broadcast %c17_i32 : i32 to vector<1x290xi32>
    %4 = arith.subi %2, %3 : vector<1x290xi32>
    %c32_i32 = arith.constant 32 : i32
    %5 = vector.broadcast %c32_i32 : i32 to vector<1x290xi32>
    %6 = arith.addi %4, %5 : vector<1x290xi32>
    %c16_i32 = arith.constant 16 : i32
    %c0_i32 = arith.constant 0 : i32
    %7 = arith.cmpi eq, %c16_i32, %c0_i32 : i32
    %c1_i32 = arith.constant 1 : i32
    %8 = arith.select %7, %c1_i32, %c16_i32 : i32
    %9 = vector.broadcast %8 : i32 to vector<1x290xi32>
    %10 = arith.remsi %6, %9 : vector<1x290xi32>
    %c0_i32_2 = arith.constant 0 : i32
    %11 = vector.broadcast %c0_i32_2 : i32 to vector<1x290xi32>
    %12 = arith.cmpi ne, %10, %11 : vector<1x290xi32>
    %c0_i32_3 = arith.constant 0 : i32
    %13 = vector.broadcast %c0_i32_3 : i32 to vector<1x290xi32>
    %14 = arith.cmpi slt, %10, %13 : vector<1x290xi32>
    %c0_i32_4 = arith.constant 0 : i32
    %15 = arith.cmpi slt, %8, %c0_i32_4 : i32
    %16 = vector.broadcast %15 : i1 to vector<1x290xi1>
    %17 = vector.broadcast %16 : vector<1x290xi1> to vector<1x290xi1>
    %18 = arith.xori %14, %17 : vector<1x290xi1>
    %19 = arith.andi %18, %12 : vector<1x290xi1>
    %20 = vector.broadcast %8 : i32 to vector<1x290xi32>
    %21 = arith.addi %10, %20 : vector<1x290xi32>
    %22 = arith.select %19, %21, %10 : vector<1x290xi1>, vector<1x290xi32>
    %c0_i32_5 = arith.constant 0 : i32
    %23 = vector.broadcast %c0_i32_5 : i32 to vector<1x290xi32>
    %24 = arith.cmpi ne, %22, %23 : vector<1x290xi32>
    %c15_i32 = arith.constant 15 : i32
    %25 = vector.broadcast %c15_i32 : i32 to vector<1x290xi32>
    %26 = arith.cmpi ne, %22, %25 : vector<1x290xi32>
    %27 = vector.extract_strided_slice %1 {offsets = [0, 0], sizes = [4, 290], strides = [1, 1]} : vector<4x324xf32> to vector<4x290xf32>
    %cst = arith.constant 0.000000e+00 : f32
    %28 = vector.shape_cast %24 : vector<1x290xi1> to vector<1x290xi1>
    %29 = vector.broadcast %28 : vector<1x290xi1> to vector<4x290xi1>
    %30 = vector.broadcast %cst : f32 to vector<4x290xf32>
    %31 = arith.select %29, %27, %30 : vector<4x290xi1>, vector<4x290xf32>
    %c0_6 = arith.constant 0 : index
    %c0_7 = arith.constant 0 : index
    %32 = vector.load %arg5[%c0_6, %c0_7] : memref<40x290xf32, #tpu.memory_space<vmem>>, vector<4x290xf32>
    tpu.vector_store %arg5[%c0_6, %c0_7], %31 {strides = array<i32>} : memref<40x290xf32, #tpu.memory_space<vmem>>, vector<4x290xf32>,
    %33 = vector.extract_strided_slice %1 {offsets = [0, 1], sizes = [4, 290], strides = [1, 1]} : vector<4x324xf32> to vector<4x290xf32>
    %c4 = arith.constant 4 : index
    %c0_8 = arith.constant 0 : index
    %34 = vector.load %arg5[%c4, %c0_8] : memref<40x290xf32, #tpu.memory_space<vmem>>, vector<4x290xf32>
    tpu.vector_store %arg5[%c4, %c0_8], %33 {strides = array<i32>} : memref<40x290xf32, #tpu.memory_space<vmem>>, vector<4x290xf32>,
    %35 = vector.extract_strided_slice %1 {offsets = [0, 2], sizes = [4, 290], strides = [1, 1]} : vector<4x324xf32> to vector<4x290xf32>
    %cst_9 = arith.constant 0.000000e+00 : f32
    %36 = vector.shape_cast %26 : vector<1x290xi1> to vector<1x290xi1>
    %37 = vector.broadcast %36 : vector<1x290xi1> to vector<4x290xi1>
    %38 = vector.broadcast %cst_9 : f32 to vector<4x290xf32>
    %39 = arith.select %37, %35, %38 : vector<4x290xi1>, vector<4x290xf32>
    %c8 = arith.constant 8 : index
    %c0_10 = arith.constant 0 : index
    %40 = vector.load %arg5[%c8, %c0_10] : memref<40x290xf32, #tpu.memory_space<vmem>>, vector<4x290xf32>
    tpu.vector_store %arg5[%c8, %c0_10], %39 {strides = array<i32>} : memref<40x290xf32, #tpu.memory_space<vmem>>, vector<4x290xf32>,
    %41 = vector.extract_strided_slice %1 {offsets = [0, 16], sizes = [4, 290], strides = [1, 1]} : vector<4x324xf32> to vector<4x290xf32>
    %cst_11 = arith.constant 0.000000e+00 : f32
    %42 = vector.shape_cast %24 : vector<1x290xi1> to vector<1x290xi1>
    %43 = vector.broadcast %42 : vector<1x290xi1> to vector<4x290xi1>
    %44 = vector.broadcast %cst_11 : f32 to vector<4x290xf32>
    %45 = arith.select %43, %41, %44 : vector<4x290xi1>, vector<4x290xf32>
    %c12 = arith.constant 12 : index
    %c0_12 = arith.constant 0 : index
    %46 = vector.load %arg5[%c12, %c0_12] : memref<40x290xf32, #tpu.memory_space<vmem>>, vector<4x290xf32>
    tpu.vector_store %arg5[%c12, %c0_12], %45 {strides = array<i32>} : memref<40x290xf32, #tpu.memory_space<vmem>>, vector<4x290xf32>,
    %47 = vector.extract_strided_slice %1 {offsets = [0, 17], sizes = [4, 290], strides = [1, 1]} : vector<4x324xf32> to vector<4x290xf32>
    %c16 = arith.constant 16 : index
    %c0_13 = arith.constant 0 : index
    %48 = vector.load %arg5[%c16, %c0_13] : memref<40x290xf32, #tpu.memory_space<vmem>>, vector<4x290xf32>
    tpu.vector_store %arg5[%c16, %c0_13], %47 {strides = array<i32>} : memref<40x290xf32, #tpu.memory_space<vmem>>, vector<4x290xf32>,
    %49 = vector.extract_strided_slice %1 {offsets = [0, 18], sizes = [4, 290], strides = [1, 1]} : vector<4x324xf32> to vector<4x290xf32>
    %cst_14 = arith.constant 0.000000e+00 : f32
    %50 = vector.shape_cast %26 : vector<1x290xi1> to vector<1x290xi1>
    %51 = vector.broadcast %50 : vector<1x290xi1> to vector<4x290xi1>
    %52 = vector.broadcast %cst_14 : f32 to vector<4x290xf32>
    %53 = arith.select %51, %49, %52 : vector<4x290xi1>, vector<4x290xf32>
    %c20 = arith.constant 20 : index
    %c0_15 = arith.constant 0 : index
    %54 = vector.load %arg5[%c20, %c0_15] : memref<40x290xf32, #tpu.memory_space<vmem>>, vector<4x290xf32>
    tpu.vector_store %arg5[%c20, %c0_15], %53 {strides = array<i32>} : memref<40x290xf32, #tpu.memory_space<vmem>>, vector<4x290xf32>,
    %55 = vector.extract_strided_slice %1 {offsets = [0, 32], sizes = [4, 290], strides = [1, 1]} : vector<4x324xf32> to vector<4x290xf32>
    %cst_16 = arith.constant 0.000000e+00 : f32
    %56 = vector.shape_cast %24 : vector<1x290xi1> to vector<1x290xi1>
    %57 = vector.broadcast %56 : vector<1x290xi1> to vector<4x290xi1>
    %58 = vector.broadcast %cst_16 : f32 to vector<4x290xf32>
    %59 = arith.select %57, %55, %58 : vector<4x290xi1>, vector<4x290xf32>
    %c24 = arith.constant 24 : index
    %c0_17 = arith.constant 0 : index
    %60 = vector.load %arg5[%c24, %c0_17] : memref<40x290xf32, #tpu.memory_space<vmem>>, vector<4x290xf32>
    tpu.vector_store %arg5[%c24, %c0_17], %59 {strides = array<i32>} : memref<40x290xf32, #tpu.memory_space<vmem>>, vector<4x290xf32>,
    %61 = vector.extract_strided_slice %1 {offsets = [0, 33], sizes = [4, 290], strides = [1, 1]} : vector<4x324xf32> to vector<4x290xf32>
    %c28 = arith.constant 28 : index
    %c0_18 = arith.constant 0 : index
    %62 = vector.load %arg5[%c28, %c0_18] : memref<40x290xf32, #tpu.memory_space<vmem>>, vector<4x290xf32>
    tpu.vector_store %arg5[%c28, %c0_18], %61 {strides = array<i32>} : memref<40x290xf32, #tpu.memory_space<vmem>>, vector<4x290xf32>,
    %63 = vector.extract_strided_slice %1 {offsets = [0, 34], sizes = [4, 290], strides = [1, 1]} : vector<4x324xf32> to vector<4x290xf32>
    %cst_19 = arith.constant 0.000000e+00 : f32
    %64 = vector.shape_cast %26 : vector<1x290xi1> to vector<1x290xi1>
    %65 = vector.broadcast %64 : vector<1x290xi1> to vector<4x290xi1>
    %66 = vector.broadcast %cst_19 : f32 to vector<4x290xf32>
    %67 = arith.select %65, %63, %66 : vector<4x290xi1>, vector<4x290xf32>
    %c32 = arith.constant 32 : index
    %c0_20 = arith.constant 0 : index
    %68 = vector.load %arg5[%c32, %c0_20] : memref<40x290xf32, #tpu.memory_space<vmem>>, vector<4x290xf32>
    tpu.vector_store %arg5[%c32, %c0_20], %67 {strides = array<i32>} : memref<40x290xf32, #tpu.memory_space<vmem>>, vector<4x290xf32>,
    %cst_21 = arith.constant 0.000000e+00 : f32
    %69 = vector.broadcast %cst_21 : f32 to vector<4x290xf32>
    %c36 = arith.constant 36 : index
    %c0_22 = arith.constant 0 : index
    %70 = vector.load %arg5[%c36, %c0_22] : memref<40x290xf32, #tpu.memory_space<vmem>>, vector<4x290xf32>
    tpu.vector_store %arg5[%c36, %c0_22], %69 {strides = array<i32>} : memref<40x290xf32, #tpu.memory_space<vmem>>, vector<4x290xf32>,
    %c0_23 = arith.constant 0 : index
    %c0_24 = arith.constant 0 : index
    %71 = vector.load %arg2[%c0_23, %c0_24] : memref<8x40xf32, #tpu.memory_space<vmem>>, vector<8x40xf32>
    %c0_25 = arith.constant 0 : index
    %c0_26 = arith.constant 0 : index
    %72 = vector.load %arg5[%c0_25, %c0_26] : memref<40x290xf32, #tpu.memory_space<vmem>>, vector<40x290xf32>
    %cst_27 = arith.constant dense<0.000000e+00> : vector<8x290xf32>
    %73 = tpu.matmul %71, %72, %cst_27 {dimension_numbers = #tpu.dot_dimension_numbers<[1], [0], [0], [1], [0, 0, 1, 1], [], []>} : vector<8x40xf32>, vector<40x290xf32>, vector<8x290xf32> -> vector<8x290xf32>
    %c17_i32_28 = arith.constant 17 : i32
    %74 = vector.broadcast %c17_i32_28 : i32 to vector<1x290xi32>
    %75 = arith.cmpi sge, %2, %74 : vector<1x290xi32>
    %c273_i32 = arith.constant 273 : i32
    %76 = vector.broadcast %c273_i32 : i32 to vector<1x290xi32>
    %77 = arith.cmpi slt, %2, %76 : vector<1x290xi32>
    %78 = arith.andi %75, %77 : vector<1x290xi1>
    %cst_29 = arith.constant 0.000000e+00 : f32
    %79 = vector.shape_cast %78 : vector<1x290xi1> to vector<1x290xi1>
    %80 = vector.broadcast %79 : vector<1x290xi1> to vector<8x290xi1>
    %81 = vector.broadcast %cst_29 : f32 to vector<8x290xf32>
    %82 = arith.select %80, %73, %81 : vector<8x290xi1>, vector<8x290xf32>
    %cst_30 = arith.constant dense<0.000000e+00> : vector<8xf32>
    %83 = vector.multi_reduction <add>, %82, %cst_30 [1] : vector<8x290xf32> to vector<8xf32>
    %84 = vector.shape_cast %83 : vector<8xf32> to vector<8x1xf32>
    %85 = arith.mulf %82, %82 : vector<8x290xf32>
    %cst_31 = arith.constant dense<0.000000e+00> : vector<8xf32>
    %86 = vector.multi_reduction <add>, %85, %cst_31 [1] : vector<8x290xf32> to vector<8xf32>
    %87 = vector.shape_cast %86 : vector<8xf32> to vector<8x1xf32>
    %cst_32 = arith.constant 3.906250e-03 : f32
    %88 = vector.broadcast %cst_32 : f32 to vector<8x1xf32>
    %89 = arith.mulf %84, %88 : vector<8x1xf32>
    %cst_33 = arith.constant 3.906250e-03 : f32
    %90 = vector.broadcast %cst_33 : f32 to vector<8x1xf32>
    %91 = arith.mulf %87, %90 : vector<8x1xf32>
    %92 = arith.mulf %89, %89 : vector<8x1xf32>
    %93 = arith.subf %91, %92 : vector<8x1xf32>
    %cst_34 = arith.constant 0.000000e+00 : f32
    %94 = vector.broadcast %cst_34 : f32 to vector<8x1xf32>
    %95 = arith.maximumf %93, %94 : vector<8x1xf32>
    %96 = vector.broadcast %89 : vector<8x1xf32> to vector<8x290xf32>
    %97 = arith.subf %82, %96 : vector<8x290xf32>
    %cst_35 = arith.constant 9.99999974E-6 : f32
    %98 = vector.broadcast %cst_35 : f32 to vector<8x1xf32>
    %99 = arith.addf %95, %98 : vector<8x1xf32>
    %100 = math.rsqrt %99 : vector<8x1xf32>
    %101 = vector.broadcast %100 : vector<8x1xf32> to vector<8x290xf32>
    %102 = arith.mulf %97, %101 : vector<8x290xf32>
    %cst_36 = arith.constant 0.000000e+00 : f32
    %cst_37 = arith.constant 6.000000e+00 : f32
    %103 = vector.broadcast %cst_36 : f32 to vector<8x290xf32>
    %104 = arith.maximumf %103, %102 : vector<8x290xf32>
    %105 = vector.broadcast %cst_37 : f32 to vector<8x290xf32>
    %106 = arith.minimumf %105, %104 : vector<8x290xf32>
    %cst_38 = arith.constant 0.000000e+00 : f32
    %107 = vector.shape_cast %78 : vector<1x290xi1> to vector<1x290xi1>
    %108 = vector.broadcast %107 : vector<1x290xi1> to vector<8x290xi1>
    %109 = vector.broadcast %cst_38 : f32 to vector<8x290xf32>
    %110 = arith.select %108, %106, %109 : vector<8x290xi1>, vector<8x290xf32>
    %111 = tpu.iota {dimensions = array<i32: 1>} : vector<1x256xi32>
    %c0_i32_39 = arith.constant 0 : i32
    %112 = vector.broadcast %c0_i32_39 : i32 to vector<1x256xi32>
    %113 = arith.subi %111, %112 : vector<1x256xi32>
    %c32_i32_40 = arith.constant 32 : i32
    %114 = vector.broadcast %c32_i32_40 : i32 to vector<1x256xi32>
    %115 = arith.addi %113, %114 : vector<1x256xi32>
    %c16_i32_41 = arith.constant 16 : i32
    %c0_i32_42 = arith.constant 0 : i32
    %116 = arith.cmpi eq, %c16_i32_41, %c0_i32_42 : i32
    %c1_i32_43 = arith.constant 1 : i32
    %117 = arith.select %116, %c1_i32_43, %c16_i32_41 : i32
    %118 = vector.broadcast %117 : i32 to vector<1x256xi32>
    %119 = arith.remsi %115, %118 : vector<1x256xi32>
    %c0_i32_44 = arith.constant 0 : i32
    %120 = vector.broadcast %c0_i32_44 : i32 to vector<1x256xi32>
    %121 = arith.cmpi ne, %119, %120 : vector<1x256xi32>
    %c0_i32_45 = arith.constant 0 : i32
    %122 = vector.broadcast %c0_i32_45 : i32 to vector<1x256xi32>
    %123 = arith.cmpi slt, %119, %122 : vector<1x256xi32>
    %c0_i32_46 = arith.constant 0 : i32
    %124 = arith.cmpi slt, %117, %c0_i32_46 : i32
    %125 = vector.broadcast %124 : i1 to vector<1x256xi1>
    %126 = vector.broadcast %125 : vector<1x256xi1> to vector<1x256xi1>
    %127 = arith.xori %123, %126 : vector<1x256xi1>
    %128 = arith.andi %127, %121 : vector<1x256xi1>
    %129 = vector.broadcast %117 : i32 to vector<1x256xi32>
    %130 = arith.addi %119, %129 : vector<1x256xi32>
    %131 = arith.select %128, %130, %119 : vector<1x256xi1>, vector<1x256xi32>
    %c0_i32_47 = arith.constant 0 : i32
    %132 = vector.broadcast %c0_i32_47 : i32 to vector<1x256xi32>
    %133 = arith.cmpi ne, %131, %132 : vector<1x256xi32>
    %c15_i32_48 = arith.constant 15 : i32
    %134 = vector.broadcast %c15_i32_48 : i32 to vector<1x256xi32>
    %135 = arith.cmpi ne, %131, %134 : vector<1x256xi32>
    %136 = vector.extract_strided_slice %110 {offsets = [0, 0], sizes = [8, 256], strides = [1, 1]} : vector<8x290xf32> to vector<8x256xf32>
    %cst_49 = arith.constant 0.000000e+00 : f32
    %137 = vector.shape_cast %133 : vector<1x256xi1> to vector<1x256xi1>
    %138 = vector.broadcast %137 : vector<1x256xi1> to vector<8x256xi1>
    %139 = vector.broadcast %cst_49 : f32 to vector<8x256xf32>
    %140 = arith.select %138, %136, %139 : vector<8x256xi1>, vector<8x256xf32>
    %c0_50 = arith.constant 0 : index
    %c0_51 = arith.constant 0 : index
    %141 = vector.load %arg6[%c0_50, %c0_51] : memref<72x256xf32, #tpu.memory_space<vmem>>, vector<8x256xf32>
    tpu.vector_store %arg6[%c0_50, %c0_51], %140 {strides = array<i32>} : memref<72x256xf32, #tpu.memory_space<vmem>>, vector<8x256xf32>,
    %142 = vector.extract_strided_slice %110 {offsets = [0, 1], sizes = [8, 256], strides = [1, 1]} : vector<8x290xf32> to vector<8x256xf32>
    %c8_52 = arith.constant 8 : index
    %c0_53 = arith.constant 0 : index
    %143 = vector.load %arg6[%c8_52, %c0_53] : memref<72x256xf32, #tpu.memory_space<vmem>>, vector<8x256xf32>
    tpu.vector_store %arg6[%c8_52, %c0_53], %142 {strides = array<i32>} : memref<72x256xf32, #tpu.memory_space<vmem>>, vector<8x256xf32>,
    %144 = vector.extract_strided_slice %110 {offsets = [0, 2], sizes = [8, 256], strides = [1, 1]} : vector<8x290xf32> to vector<8x256xf32>
    %cst_54 = arith.constant 0.000000e+00 : f32
    %145 = vector.shape_cast %135 : vector<1x256xi1> to vector<1x256xi1>
    %146 = vector.broadcast %145 : vector<1x256xi1> to vector<8x256xi1>
    %147 = vector.broadcast %cst_54 : f32 to vector<8x256xf32>
    %148 = arith.select %146, %144, %147 : vector<8x256xi1>, vector<8x256xf32>
    %c16_55 = arith.constant 16 : index
    %c0_56 = arith.constant 0 : index
    %149 = vector.load %arg6[%c16_55, %c0_56] : memref<72x256xf32, #tpu.memory_space<vmem>>, vector<8x256xf32>
    tpu.vector_store %arg6[%c16_55, %c0_56], %148 {strides = array<i32>} : memref<72x256xf32, #tpu.memory_space<vmem>>, vector<8x256xf32>,
    %150 = vector.extract_strided_slice %110 {offsets = [0, 16], sizes = [8, 256], strides = [1, 1]} : vector<8x290xf32> to vector<8x256xf32>
    %cst_57 = arith.constant 0.000000e+00 : f32
    %151 = vector.shape_cast %133 : vector<1x256xi1> to vector<1x256xi1>
    %152 = vector.broadcast %151 : vector<1x256xi1> to vector<8x256xi1>
    %153 = vector.broadcast %cst_57 : f32 to vector<8x256xf32>
    %154 = arith.select %152, %150, %153 : vector<8x256xi1>, vector<8x256xf32>
    %c24_58 = arith.constant 24 : index
    %c0_59 = arith.constant 0 : index
    %155 = vector.load %arg6[%c24_58, %c0_59] : memref<72x256xf32, #tpu.memory_space<vmem>>, vector<8x256xf32>
    tpu.vector_store %arg6[%c24_58, %c0_59], %154 {strides = array<i32>} : memref<72x256xf32, #tpu.memory_space<vmem>>, vector<8x256xf32>,
    %156 = vector.extract_strided_slice %110 {offsets = [0, 17], sizes = [8, 256], strides = [1, 1]} : vector<8x290xf32> to vector<8x256xf32>
    %c32_60 = arith.constant 32 : index
    %c0_61 = arith.constant 0 : index
    %157 = vector.load %arg6[%c32_60, %c0_61] : memref<72x256xf32, #tpu.memory_space<vmem>>, vector<8x256xf32>
    tpu.vector_store %arg6[%c32_60, %c0_61], %156 {strides = array<i32>} : memref<72x256xf32, #tpu.memory_space<vmem>>, vector<8x256xf32>,
    %158 = vector.extract_strided_slice %110 {offsets = [0, 18], sizes = [8, 256], strides = [1, 1]} : vector<8x290xf32> to vector<8x256xf32>
    %cst_62 = arith.constant 0.000000e+00 : f32
    %159 = vector.shape_cast %135 : vector<1x256xi1> to vector<1x256xi1>
    %160 = vector.broadcast %159 : vector<1x256xi1> to vector<8x256xi1>
    %161 = vector.broadcast %cst_62 : f32 to vector<8x256xf32>
    %162 = arith.select %160, %158, %161 : vector<8x256xi1>, vector<8x256xf32>
    %c40 = arith.constant 40 : index
    %c0_63 = arith.constant 0 : index
    %163 = vector.load %arg6[%c40, %c0_63] : memref<72x256xf32, #tpu.memory_space<vmem>>, vector<8x256xf32>
    tpu.vector_store %arg6[%c40, %c0_63], %162 {strides = array<i32>} : memref<72x256xf32, #tpu.memory_space<vmem>>, vector<8x256xf32>,
    %164 = vector.extract_strided_slice %110 {offsets = [0, 32], sizes = [8, 256], strides = [1, 1]} : vector<8x290xf32> to vector<8x256xf32>
    %cst_64 = arith.constant 0.000000e+00 : f32
    %165 = vector.shape_cast %133 : vector<1x256xi1> to vector<1x256xi1>
    %166 = vector.broadcast %165 : vector<1x256xi1> to vector<8x256xi1>
    %167 = vector.broadcast %cst_64 : f32 to vector<8x256xf32>
    %168 = arith.select %166, %164, %167 : vector<8x256xi1>, vector<8x256xf32>
    %c48 = arith.constant 48 : index
    %c0_65 = arith.constant 0 : index
    %169 = vector.load %arg6[%c48, %c0_65] : memref<72x256xf32, #tpu.memory_space<vmem>>, vector<8x256xf32>
    tpu.vector_store %arg6[%c48, %c0_65], %168 {strides = array<i32>} : memref<72x256xf32, #tpu.memory_space<vmem>>, vector<8x256xf32>,
    %170 = vector.extract_strided_slice %110 {offsets = [0, 33], sizes = [8, 256], strides = [1, 1]} : vector<8x290xf32> to vector<8x256xf32>
    %c56 = arith.constant 56 : index
    %c0_66 = arith.constant 0 : index
    %171 = vector.load %arg6[%c56, %c0_66] : memref<72x256xf32, #tpu.memory_space<vmem>>, vector<8x256xf32>
    tpu.vector_store %arg6[%c56, %c0_66], %170 {strides = array<i32>} : memref<72x256xf32, #tpu.memory_space<vmem>>, vector<8x256xf32>,
    %172 = vector.extract_strided_slice %110 {offsets = [0, 34], sizes = [8, 256], strides = [1, 1]} : vector<8x290xf32> to vector<8x256xf32>
    %cst_67 = arith.constant 0.000000e+00 : f32
    %173 = vector.shape_cast %135 : vector<1x256xi1> to vector<1x256xi1>
    %174 = vector.broadcast %173 : vector<1x256xi1> to vector<8x256xi1>
    %175 = vector.broadcast %cst_67 : f32 to vector<8x256xf32>
    %176 = arith.select %174, %172, %175 : vector<8x256xi1>, vector<8x256xf32>
    %c64 = arith.constant 64 : index
    %c0_68 = arith.constant 0 : index
    %177 = vector.load %arg6[%c64, %c0_68] : memref<72x256xf32, #tpu.memory_space<vmem>>, vector<8x256xf32>
    tpu.vector_store %arg6[%c64, %c0_68], %176 {strides = array<i32>} : memref<72x256xf32, #tpu.memory_space<vmem>>, vector<8x256xf32>,
    %c0_69 = arith.constant 0 : index
    %c0_70 = arith.constant 0 : index
    %178 = vector.load %arg3[%c0_69, %c0_70] : memref<8x72xf32, #tpu.memory_space<vmem>>, vector<8x72xf32>
    %c0_71 = arith.constant 0 : index
    %c0_72 = arith.constant 0 : index
    %179 = vector.load %arg6[%c0_71, %c0_72] : memref<72x256xf32, #tpu.memory_space<vmem>>, vector<72x256xf32>
    %cst_73 = arith.constant dense<0.000000e+00> : vector<8x256xf32>
    %180 = tpu.matmul %178, %179, %cst_73 {dimension_numbers = #tpu.dot_dimension_numbers<[1], [0], [0], [1], [0, 0, 1, 1], [], []>} : vector<8x72xf32>, vector<72x256xf32>, vector<8x256xf32> -> vector<8x256xf32>
    %cst_74 = arith.constant dense<0.000000e+00> : vector<8xf32>
    %181 = vector.multi_reduction <add>, %180, %cst_74 [1] : vector<8x256xf32> to vector<8xf32>
    %182 = vector.shape_cast %181 : vector<8xf32> to vector<8x1xf32>
    %183 = arith.mulf %180, %180 : vector<8x256xf32>
    %cst_75 = arith.constant dense<0.000000e+00> : vector<8xf32>
    %184 = vector.multi_reduction <add>, %183, %cst_75 [1] : vector<8x256xf32> to vector<8xf32>
    %185 = vector.shape_cast %184 : vector<8xf32> to vector<8x1xf32>
    %cst_76 = arith.constant 3.906250e-03 : f32
    %186 = vector.broadcast %cst_76 : f32 to vector<8x1xf32>
    %187 = arith.mulf %182, %186 : vector<8x1xf32>
    %cst_77 = arith.constant 3.906250e-03 : f32
    %188 = vector.broadcast %cst_77 : f32 to vector<8x1xf32>
    %189 = arith.mulf %185, %188 : vector<8x1xf32>
    %190 = arith.mulf %187, %187 : vector<8x1xf32>
    %191 = arith.subf %189, %190 : vector<8x1xf32>
    %cst_78 = arith.constant 0.000000e+00 : f32
    %192 = vector.broadcast %cst_78 : f32 to vector<8x1xf32>
    %193 = arith.maximumf %191, %192 : vector<8x1xf32>
    %194 = vector.broadcast %187 : vector<8x1xf32> to vector<8x256xf32>
    %195 = arith.subf %180, %194 : vector<8x256xf32>
    %cst_79 = arith.constant 9.99999974E-6 : f32
    %196 = vector.broadcast %cst_79 : f32 to vector<8x1xf32>
    %197 = arith.addf %193, %196 : vector<8x1xf32>
    %198 = math.rsqrt %197 : vector<8x1xf32>
    %199 = vector.broadcast %198 : vector<8x1xf32> to vector<8x256xf32>
    %200 = arith.mulf %195, %199 : vector<8x256xf32>
    %cst_80 = arith.constant 0.000000e+00 : f32
    %cst_81 = arith.constant 6.000000e+00 : f32
    %201 = vector.broadcast %cst_80 : f32 to vector<8x256xf32>
    %202 = arith.maximumf %201, %200 : vector<8x256xf32>
    %203 = vector.broadcast %cst_81 : f32 to vector<8x256xf32>
    %204 = arith.minimumf %203, %202 : vector<8x256xf32>
    %c0_82 = arith.constant 0 : index
    %c0_83 = arith.constant 0 : index
    %c0_84 = arith.constant 0 : index
    %205 = vector.load %arg4[%c0_82, %c0_83, %c0_84] : memref<1x8x256xf32, #tpu.memory_space<vmem>>, vector<1x8x256xf32>
    %206 = vector.shape_cast %205 : vector<1x8x256xf32> to vector<8x256xf32>
    %207 = vector.shape_cast %204 : vector<8x256xf32> to vector<1x8x256xf32>
    tpu.vector_store %arg4[%c0_82, %c0_83, %c0_84], %207 {strides = array<i32>} : memref<1x8x256xf32, #tpu.memory_space<vmem>>, vector<1x8x256xf32>,
    return
  }
  func.func @transform_0(%arg0: i32) -> (i32, i32, i32) {
    %c0_i32 = arith.constant 0 : i32
    %c0_i32_0 = arith.constant 0 : i32
    %c0_i32_1 = arith.constant 0 : i32
    return %arg0, %c0_i32, %c0_i32_0 : i32, i32, i32
  }
  func.func @transform_1(%arg0: i32) -> (i32, i32) {
    %c0_i32 = arith.constant 0 : i32
    %c0_i32_0 = arith.constant 0 : i32
    %c0_i32_1 = arith.constant 0 : i32
    return %c0_i32, %c0_i32_0 : i32, i32
  }
  func.func @transform_2(%arg0: i32) -> (i32, i32) {
    %c0_i32 = arith.constant 0 : i32
    %c0_i32_0 = arith.constant 0 : i32
    %c0_i32_1 = arith.constant 0 : i32
    return %c0_i32, %c0_i32_0 : i32, i32
  }
  func.func @transform_3(%arg0: i32) -> (i32, i32, i32) {
    %c0_i32 = arith.constant 0 : i32
    %c0_i32_0 = arith.constant 0 : i32
    %c0_i32_1 = arith.constant 0 : i32
    return %arg0, %c0_i32, %c0_i32_0 : i32, i32, i32
  }
}

</mosaic_0001>

<llo_original>
// kernel: double_cbr.1
$region0: #{double_cbr.1}
  #allocation0 [shape = 'u32[]', space=smem, size = 0x4, offset = 0x4, fixed_abs, tag = 'smem constant byte address 0x4 - core index']
  #allocation1 [shape = 'u32[144,128]{1,0:T(1,128)}', space=vmem, size = 0x12000, scoped, tag = 'internal scratch']
  #allocation2 [shape = 'f32[40,290]{1,0:T(8,128)}', space=vmem, size = 0xf000, scoped, tag = 'scratch operand']
  #allocation3 [shape = 'f32[72,256]{1,0:T(8,128)}', space=vmem, size = 0x12000, scoped, tag = 'scratch operand']
  %s0 = inlined_call_operand.vmem [shape: f32[2,4,324], index: 0, kind: input, shape index: {}]
  %s1 = inlined_call_operand.vmem [shape: f32[8,40], index: 1, kind: input, shape index: {}]
  %s2 = inlined_call_operand.vmem [shape: f32[8,72], index: 2, kind: input, shape index: {}]
  %s3 = inlined_call_operand.vmem [shape: f32[2,8,256], index: 3, kind: output, shape index: {}]
  %s4 = sld [smem:[#allocation0]]
  $region45: #{double_cbr.1} parent=0
    _
  %s6 = ssub.s32 1, %s4
  %s7 = scalar_select 0, %s6, %s4
  loop: start=0, step=1, limit=4
  $region2: #{double_cbr.1} parent=0 // loop_pre_header
    _
  $region3: #{double_cbr.1} parent=0 // loop_header
    %s9 = sphi 0, %s13
    %p10 = scmp.ge.s32.totalorder %s9, 4
    %s19 = sphi 0, %s21
    %s22 = sphi 0, %s19
    %s23 = sphi 0, %s22
    %s39 = sphi 0, %s23
    %s43 = sphi 0, %s43
    %s45 = sphi 0, %s43
    %s46 = sphi 0, %s45
    %s60 = sphi 0, %s46
    %s64 = sphi 0, %s64
    %s66 = sphi 0, %s64
    %s67 = sphi 0, %s66
    %s81 = sphi 0, %s67
    %s87 = sphi 0, %s89
    %s90 = sphi 0, %s87
    %s91 = sphi 0, %s90
    %s107 = sphi 0, %s91
  $region4: #{double_cbr.1} parent=0 // loop_header_branch
    %12 = sbr.rel (%p10) target = $region8
  $region5: #{double_cbr.1} parent=0 // loop_body
    %s14 = ssub.s32 %s9, 1
    %s15 = ssub.s32 %s9, 2
    %s16 = sadd.s32 %s9, 1
    %s17 = ssub.s32 %s9, %s16
    %p18 = scmp.eq.s32.totalorder %s17, 0
    %s20 = sadd.s32 %s19, 1
    %s21 = scalar_select %p18, %s19, %s20
    %p24 = pneg %p18
    %p25 = scmp.eq.s32.totalorder %s9, 1
    %p26 = por %p24, %p25
    %p27 = scmp.ne.s32.totalorder %s19, %s22
    %p28 = scmp.eq.s32.totalorder %s9, 0
    %p29 = por %p27, %p28
    %p30 = scmp.ne.s32.totalorder %s19, %s22
    %p31 = scmp.eq.s32.totalorder %s14, 1
    %p32 = por %p30, %p31
    %p33 = scmp.ne.s32.totalorder %s22, %s23
    %p34 = scmp.eq.s32.totalorder %s14, 0
    %p35 = por %p33, %p34
    %p36 = scmp.ne.s32.totalorder %s22, %s23
    %p37 = scmp.eq.s32.totalorder %s15, 1
    %p38 = por %p36, %p37
    %p40 = scmp.ne.s32.totalorder %s23, %s39
    %p41 = scmp.eq.s32.totalorder %s15, 0
    %p42 = por %p40, %p41
    %s44 = sadd.s32 %s43, 1
    %p47 = scmp.eq.s32.totalorder %s9, 1
    %p48 = scmp.ne.s32.totalorder %s43, %s45
    %p49 = scmp.eq.s32.totalorder %s9, 0
    %p50 = por %p48, %p49
    %p51 = scmp.ne.s32.totalorder %s43, %s45
    %p52 = scmp.eq.s32.totalorder %s14, 1
    %p53 = por %p51, %p52
    %p54 = scmp.ne.s32.totalorder %s45, %s46
    %p55 = scmp.eq.s32.totalorder %s14, 0
    %p56 = por %p54, %p55
    %p57 = scmp.ne.s32.totalorder %s45, %s46
    %p58 = scmp.eq.s32.totalorder %s15, 1
    %p59 = por %p57, %p58
    %p61 = scmp.ne.s32.totalorder %s46, %s60
    %p62 = scmp.eq.s32.totalorder %s15, 0
    %p63 = por %p61, %p62
    %s65 = sadd.s32 %s64, 1
    %p68 = scmp.eq.s32.totalorder %s9, 1
    %p69 = scmp.ne.s32.totalorder %s64, %s66
    %p70 = scmp.eq.s32.totalorder %s9, 0
    %p71 = por %p69, %p70
    %p72 = scmp.ne.s32.totalorder %s64, %s66
    %p73 = scmp.eq.s32.totalorder %s14, 1
    %p74 = por %p72, %p73
    %p75 = scmp.ne.s32.totalorder %s66, %s67
    %p76 = scmp.eq.s32.totalorder %s14, 0
    %p77 = por %p75, %p76
    %p78 = scmp.ne.s32.totalorder %s66, %s67
    %p79 = scmp.eq.s32.totalorder %s15, 1
    %p80 = por %p78, %p79
    %p82 = scmp.ne.s32.totalorder %s67, %s81
    %p83 = scmp.eq.s32.totalorder %s15, 0
    %p84 = por %p82, %p83
    %s85 = ssub.s32 %s9, %s16
    %p86 = scmp.eq.s32.totalorder %s85, 0
    %s88 = sadd.s32 %s87, 1
    %s89 = scalar_select %p86, %s87, %s88
    %p92 = pneg %p86
    %p93 = scmp.eq.s32.totalorder %s9, 1
    %p94 = por %p92, %p93
    %p95 = scmp.ne.s32.totalorder %s87, %s90
    %p96 = scmp.eq.s32.totalorder %s9, 0
    %p97 = por %p95, %p96
    %p98 = scmp.ne.s32.totalorder %s87, %s90
    %p99 = scmp.eq.s32.totalorder %s14, 1
    %p100 = por %p98, %p99
    %p101 = scmp.ne.s32.totalorder %s90, %s91
    %p102 = scmp.eq.s32.totalorder %s14, 0
    %p103 = por %p101, %p102
    %p104 = scmp.ne.s32.totalorder %s90, %s91
    %p105 = scmp.eq.s32.totalorder %s15, 1
    %p106 = por %p104, %p105
    %p108 = scmp.ne.s32.totalorder %s91, %s107
    %p109 = scmp.eq.s32.totalorder %s15, 0
    %p110 = por %p108, %p109
    %p111 = scmp.le.s32.totalorder 1, %s9
    %p112 = scmp.lt.s32.totalorder %s9, 3
    %p113 = pnand %p111, %p112
    %p114 = pneg %p113
    // Predicated region
    $region9: #{double_cbr.1} parent=5 // pred_check
      _
    $region10: #{double_cbr.1} parent=5 // pred_check_branch
      %116 = sbr.rel (%p113) target = $region12
    $region11: #{double_cbr.1} parent=5 // pred_region
      %s117 = ssub.s32 %s9, 1
      // Predicated region
      $region13: #{double_cbr.1} parent=11 // pred_check
        %p118 = pneg %p56
      $region14: #{double_cbr.1} parent=11 // pred_check_branch
        %120 = sbr.rel (%p118) target = $region16
      $region15: #{double_cbr.1} parent=11 // pred_region
        _
      $region16: #{double_cbr.1} parent=11 // pred_fallthru
        _
      // Predicated region
      $region17: #{double_cbr.1} parent=11 // pred_check
        %p121 = pneg %p77
      $region18: #{double_cbr.1} parent=11 // pred_check_branch
        %123 = sbr.rel (%p121) target = $region20
      $region19: #{double_cbr.1} parent=11 // pred_region
        _
      $region20: #{double_cbr.1} parent=11 // pred_fallthru
        _
    $region12: #{double_cbr.1} parent=5 // pred_fallthru
      _
    %p124 = scmp.lt.s32.totalorder %s9, 2
    // Predicated region
    $region21: #{double_cbr.1} parent=5 // pred_check
      %p125 = pneg %p124
    $region22: #{double_cbr.1} parent=5 // pred_check_branch
      %127 = sbr.rel (%p125) target = $region24
    $region23: #{double_cbr.1} parent=5 // pred_region
      // Predicated region
      $region25: #{double_cbr.1} parent=23 // pred_check
        %p128 = pneg %p29
      $region26: #{double_cbr.1} parent=23 // pred_check_branch
        %130 = sbr.rel (%p128) target = $region28
      $region27: #{double_cbr.1} parent=23 // pred_region
        %p131 = scmp.lt.s32.totalorder %s9, 1
        %s132 = scalar_select %p131, %s9, 1
        %s133 = smul.addr %s132, 3
        %s134 = smul.addr %s133, 4
        %s135 = scalar_lea.vmem %s0, %s134
      $region28: #{double_cbr.1} parent=23 // pred_fallthru
        _
    $region24: #{double_cbr.1} parent=5 // pred_fallthru
      _
    %p136 = scmp.le.s32.totalorder 1, %s9
    %p137 = scmp.lt.s32.totalorder %s9, 3
    %p138 = pnand %p136, %p137
    %p139 = pneg %p138
    // Predicated region
    $region29: #{double_cbr.1} parent=5 // pred_check
      _
    $region30: #{double_cbr.1} parent=5 // pred_check_branch
      %141 = sbr.rel (%p138) target = $region32
    $region31: #{double_cbr.1} parent=5 // pred_region
      %s142 = ssub.s32 %s9, 1
      %p143 = scmp.lt.s32.totalorder %s14, 1
      %s144 = scalar_select %p143, %s14, 1
      %s145 = smul.addr %s144, 3
      %s146 = smul.addr %s145, 4
      %s147 = scalar_lea.vmem %s0, %s146
      %p148 = pneg %p35
      %p149 = pneg %p32
      %p150 = pneg %p56
      %p151 = pneg %p53
      %p152 = pneg %p77
      %p153 = pneg %p74
      %p154 = pneg %p103
      %p155 = pneg %p100
      %p156 = scmp.lt.s32.totalorder %s14, 1
      %s157 = scalar_select %p156, %s14, 1
      %s158 = smul.addr %s157, 2
      %s159 = smul.addr %s158, 8
      %s160 = scalar_lea.vmem %s3, %s159
      %p161 = scmp.lt.s32.totalorder %s14, 1
      %s162 = scalar_select %p161, %s14, 1
      %s163 = smul.addr %s162, 3
      %s164 = smul.addr %s163, 4
      %s165 = scalar_lea.vmem %s0, %s164
      %p166 = scmp.lt.s32.totalorder %s14, 1
      %s167 = scalar_select %p166, %s14, 1
      %s168 = smul.addr %s167, 2
      %s169 = smul.addr %s168, 8
      %s170 = scalar_lea.vmem %s3, %s169
      %v171 = vld [vmem:[%s165] sm:$0xff]
      %v172 = vld [vmem:[%s165 + $0x8] sm:$0xf]
      %v173 = vlaneseq
      %v174 = vand.u32 %v173, 127
      %v175 = vadd.s32 %v174, 128
      %v176 = vadd.s32 %v174, 256
      %v177 = vsub.s32 %v174, 17
      %v178 = vsub.s32 %v175, 17
      %v179 = vsub.s32 %v176, 17
      %v180 = vadd.s32 %v177, 32
      %v181 = vadd.s32 %v178, 32
      %v182 = vadd.s32 %v179, 32
      %vm183 = vcmp.lt.s32.totalorder %v180, 0
      %v184 = vsub.s32 0, %v180
      %v185 = vsel %vm183, %v184, %v180
      %v186 = vshrl.u32 %v185, 4
      %v187 = vand.u32 %v185, 15
      %v188 = vsub.s32 0, %v187
      %v189 = vsel %vm183, %v188, %v187
      %vm190 = vcmp.lt.s32.totalorder %v181, 0
      %v191 = vsub.s32 0, %v181
      %v192 = vsel %vm190, %v191, %v181
      %v193 = vshrl.u32 %v192, 4
      %v194 = vand.u32 %v192, 15
      %v195 = vsub.s32 0, %v194
      %v196 = vsel %vm190, %v195, %v194
      %vm197 = vcmp.lt.s32.totalorder %v182, 0
      %v198 = vsub.s32 0, %v182
      %v199 = vsel %vm197, %v198, %v182
      %v200 = vshrl.u32 %v199, 4
      %v201 = vand.u32 %v199, 15
      %v202 = vsub.s32 0, %v201
      %v203 = vsel %vm197, %v202, %v201
      %vm204 = vcmp.ne.s32.totalorder %v189, 0
      %vm205 = vcmp.ne.s32.totalorder %v196, 0
      %vm206 = vcmp.ne.s32.totalorder %v203, 0
      %vm207 = vcmp.lt.s32.totalorder %v189, 0
      %vm208 = vcmp.lt.s32.totalorder %v196, 0
      %vm209 = vcmp.lt.s32.totalorder %v203, 0
      %vm210 = vmand %vm207, %vm204
      %vm211 = vmand %vm208, %vm205
      %vm212 = vmand %vm209, %vm206
      %v213 = vadd.s32 %v189, 16
      %v214 = vadd.s32 %v196, 16
      %v215 = vadd.s32 %v203, 16
      %v216 = vsel %vm210, %v213, %v189
      %v217 = vsel %vm211, %v214, %v196
      %v218 = vsel %vm212, %v215, %v203
      %vm219 = vcmp.ne.s32.totalorder %v216, 0
      %vm220 = vcmp.ne.s32.totalorder %v217, 0
      %vm221 = vcmp.ne.s32.totalorder %v218, 0
      %vm222 = vcmp.ne.s32.totalorder %v216, 15
      %vm223 = vcmp.ne.s32.totalorder %v217, 15
      %vm224 = vcmp.ne.s32.totalorder %v218, 15
      %v225 = vsel %vm219, 1, 0
      %v226 = vsel %vm220, 1, 0
      %v227 = vsel %vm221, 1, 0
      %vm228 = vcmp.eq.s32.totalorder %v225, 1
      %vm229 = vcmp.eq.s32.totalorder %v226, 1
      %vm230 = vcmp.eq.s32.totalorder %v227, 1
      %v233 = vcombine.high %v171, %v171
      %v235 = vsel %vm228, %v171, 0.0
      %v236 = vsel %vm229, %v233, 0.0
      %v237 = vsel %vm230, %v172, 0.0
      %238 = vst [vmem:[#allocation2] sm:$0xf] %v235
      %239 = vst [vmem:[#allocation2 + $0x8] sm:$0xf] %v236
      %vm240 = vcmask 273408
      %241 = vst.msk [vmem:[#allocation2 + $0x10] sm:$0xf] %vm240, %v237
      %v242 = vcombine.low %v171, %v171
      %v243 = vcombine.low %v172, %v172
      %244 = vrot.lane.b32.xlu0 %v242, 127
      %v245 = vpop.permute.xlu0 %244
      %246 = vrot.lane.b32.xlu0 %v171, 127
      %v247 = vpop.permute.xlu0 %246
      %248 = vrot.lane.b32.xlu0 %v243, 127
      %v249 = vpop.permute.xlu0 %248
      %vm250 = vcmask 1039360
      %v251 = vsel %vm250, %v245, %v247
      %v252 = vsel %vm250, %v247, %v249
      %256 = vst [vmem:[#allocation2] sm:$0xf0] %v251
      %257 = vst [vmem:[#allocation2 + $0x8] sm:$0xf0] %v252
      %vm258 = vcmask 277508
      %259 = vst.msk [vmem:[#allocation2 + $0x10] sm:$0xf0] %vm258, %v249
      %v260 = vsel %vm222, 1, 0
      %v261 = vsel %vm223, 1, 0
      %v262 = vsel %vm224, 1, 0
      %vm263 = vcmp.eq.s32.totalorder %v260, 1
      %vm264 = vcmp.eq.s32.totalorder %v261, 1
      %vm265 = vcmp.eq.s32.totalorder %v262, 1
      %266 = vrot.lane.b32.xlu0 %v171, 126
      %v267 = vpop.permute.xlu0 %266
      %268 = vrot.lane.b32.xlu0 %v233, 126
      %v269 = vpop.permute.xlu0 %268
      %270 = vrot.lane.b32.xlu0 %v172, 126
      %v271 = vpop.permute.xlu0 %270
      %vm272 = vcmask 1031168
      %v273 = vsel %vm272, %v267, %v269
      %v274 = vsel %vm272, %v269, %v271
      %v278 = vsel %vm263, %v273, 0.0
      %v279 = vsel %vm264, %v274, 0.0
      %v280 = vsel %vm265, %v271, 0.0
      %281 = vst [vmem:[#allocation2 + $0x18] sm:$0xf] %v278
      %282 = vst [vmem:[#allocation2 + $0x20] sm:$0xf] %v279
      %283 = vst.msk [vmem:[#allocation2 + $0x28] sm:$0xf] %vm240, %v280
      %284 = vrot.lane.b32.xlu0 %v171, 112
      %v285 = vpop.permute.xlu0 %284
      %286 = vrot.lane.b32.xlu0 %v233, 112
      %v287 = vpop.permute.xlu0 %286
      %288 = vrot.lane.b32.xlu0 %v172, 112
      %v289 = vpop.permute.xlu0 %288
      %vm290 = vcmask 916480
      %v291 = vsel %vm290, %v285, %v287
      %v292 = vsel %vm290, %v287, %v289
      %v296 = vsel %vm228, %v291, 0.0
      %v297 = vsel %vm229, %v292, 0.0
      %v298 = vsel %vm230, %v289, 0.0
      %v302 = vrot.slane %v296, 4
      %v303 = vrot.slane %v297, 4
      %v304 = vrot.slane %v298, 4
      %308 = vst [vmem:[#allocation2 + $0x18] sm:$0xf0] %v302
      %309 = vst [vmem:[#allocation2 + $0x20] sm:$0xf0] %v303
      %310 = vst.msk [vmem:[#allocation2 + $0x28] sm:$0xf0] %vm258, %v304
      %311 = vrot.lane.b32.xlu0 %v171, 111
      %v312 = vpop.permute.xlu0 %311
      %313 = vrot.lane.b32.xlu0 %v233, 111
      %v314 = vpop.permute.xlu0 %313
      %315 = vrot.lane.b32.xlu0 %v172, 111
      %v316 = vpop.permute.xlu0 %315
      %vm317 = vcmask 908288
      %v318 = vsel %vm317, %v312, %v314
      %v319 = vsel %vm317, %v314, %v316
      %323 = vst [vmem:[#allocation2 + $0x30] sm:$0xf] %v318
      %324 = vst [vmem:[#allocation2 + $0x38] sm:$0xf] %v319
      %325 = vst.msk [vmem:[#allocation2 + $0x40] sm:$0xf] %vm240, %v316
      %326 = vrot.lane.b32.xlu0 %v171, 110
      %v327 = vpop.permute.xlu0 %326
      %328 = vrot.lane.b32.xlu0 %v233, 110
      %v329 = vpop.permute.xlu0 %328
      %330 = vrot.lane.b32.xlu0 %v172, 110
      %v331 = vpop.permute.xlu0 %330
      %vm332 = vcmask 900096
      %v333 = vsel %vm332, %v327, %v329
      %v334 = vsel %vm332, %v329, %v331
      %v338 = vsel %vm263, %v333, 0.0
      %v339 = vsel %vm264, %v334, 0.0
      %v340 = vsel %vm265, %v331, 0.0
      %v344 = vrot.slane %v338, 4
      %v345 = vrot.slane %v339, 4
      %v346 = vrot.slane %v340, 4
      %350 = vst [vmem:[#allocation2 + $0x30] sm:$0xf0] %v344
      %351 = vst [vmem:[#allocation2 + $0x38] sm:$0xf0] %v345
      %352 = vst.msk [vmem:[#allocation2 + $0x40] sm:$0xf0] %vm258, %v346
      %353 = vrot.lane.b32.xlu0 %v171, 96
      %v354 = vpop.permute.xlu0 %353
      %355 = vrot.lane.b32.xlu0 %v233, 96
      %v356 = vpop.permute.xlu0 %355
      %357 = vrot.lane.b32.xlu0 %v172, 96
      %v358 = vpop.permute.xlu0 %357
      %vm359 = vcmask 785408
      %v360 = vsel %vm359, %v354, %v356
      %v361 = vsel %vm359, %v356, %v358
      %v365 = vsel %vm228, %v360, 0.0
      %v366 = vsel %vm229, %v361, 0.0
      %v367 = vsel %vm230, %v358, 0.0
      %368 = vst [vmem:[#allocation2 + $0x48] sm:$0xf] %v365
      %369 = vst [vmem:[#allocation2 + $0x50] sm:$0xf] %v366
      %370 = vst.msk [vmem:[#allocation2 + $0x58] sm:$0xf] %vm240, %v367
      %371 = vrot.lane.b32.xlu0 %v242, 95
      %v372 = vpop.permute.xlu0 %371
      %373 = vrot.lane.b32.xlu0 %v171, 95
      %v374 = vpop.permute.xlu0 %373
      %375 = vrot.lane.b32.xlu0 %v243, 95
      %v376 = vpop.permute.xlu0 %375
      %vm377 = vcmask 777216
      %v378 = vsel %vm377, %v372, %v374
      %v379 = vsel %vm377, %v374, %v376
      %383 = vst [vmem:[#allocation2 + $0x48] sm:$0xf0] %v378
      %384 = vst [vmem:[#allocation2 + $0x50] sm:$0xf0] %v379
      %385 = vst.msk [vmem:[#allocation2 + $0x58] sm:$0xf0] %vm258, %v376
      %386 = vrot.lane.b32.xlu0 %v171, 94
      %v387 = vpop.permute.xlu0 %386
      %388 = vrot.lane.b32.xlu0 %v233, 94
      %v389 = vpop.permute.xlu0 %388
      %390 = vrot.lane.b32.xlu0 %v172, 94
      %v391 = vpop.permute.xlu0 %390
      %vm392 = vcmask 769024
      %v393 = vsel %vm392, %v387, %v389
      %v394 = vsel %vm392, %v389, %v391
      %v398 = vsel %vm263, %v393, 0.0
      %v399 = vsel %vm264, %v394, 0.0
      %v400 = vsel %vm265, %v391, 0.0
      %401 = vst [vmem:[#allocation2 + $0x60] sm:$0xf] %v398
      %402 = vst [vmem:[#allocation2 + $0x68] sm:$0xf] %v399
      %403 = vst.msk [vmem:[#allocation2 + $0x70] sm:$0xf] %vm240, %v400
      %404 = vst [vmem:[#allocation2 + $0x60] sm:$0xf0] 0.0
      %405 = vst [vmem:[#allocation2 + $0x68] sm:$0xf0] 0.0
      %406 = vst.msk [vmem:[#allocation2 + $0x70] sm:$0xf0] %vm258, 0.0
      %v407 = vld [vmem:[%s1] sm:$0xff]
      %v408 = vld [vmem:[#allocation2] sm:$0xff]
      %v409 = vld [vmem:[#allocation2 + $0x8] sm:$0xff]
      %v410 = vld [vmem:[#allocation2 + $0x10] sm:$0xff]
      %v411 = vld [vmem:[#allocation2 + $0x18] sm:$0xff]
      %v412 = vld [vmem:[#allocation2 + $0x20] sm:$0xff]
      %v413 = vld [vmem:[#allocation2 + $0x28] sm:$0xff]
      %v414 = vld [vmem:[#allocation2 + $0x30] sm:$0xff]
      %v415 = vld [vmem:[#allocation2 + $0x38] sm:$0xff]
      %v416 = vld [vmem:[#allocation2 + $0x40] sm:$0xff]
      %v417 = vld [vmem:[#allocation2 + $0x48] sm:$0xff]
      %v418 = vld [vmem:[#allocation2 + $0x50] sm:$0xff]
      %v419 = vld [vmem:[#allocation2 + $0x58] sm:$0xff]
      %v420 = vld [vmem:[#allocation2 + $0x60] sm:$0xff]
      %v421 = vld [vmem:[#allocation2 + $0x68] sm:$0xff]
      %v422 = vld [vmem:[#allocation2 + $0x70] sm:$0xff]
      %vm423 = vcmask 326656
      %v425 = vsel %vm423, %v407, 0
      %427 = vmatprep.subr.mxu0 %v409
      %428 = vmatpush1.msra.mxu0 %v408
      %429 = vmatprep.subr.mxu0 %v412
      %430 = vmatpush1.msra.mxu0 %v411
      %431 = vmatprep.subr.mxu0 %v415
      %432 = vmatpush1.msra.mxu0 %v414
      %433 = vmatprep.subr.mxu0 %v418
      %434 = vmatpush1.msra.mxu0 %v417
      %435 = vmatprep.subr.mxu0 %v421
      %436 = vmatpush1.msra.mxu0 %v420
      %437 = vmatprep.subr.mxu0 0.0
      %438 = vmatpush1.msra.mxu0 0.0
      %439 = vmatprep.subr.mxu0 0.0
      %440 = vmatpush1.msra.mxu0 0.0
      %441 = vmatprep.subr.mxu0 0.0
      %442 = vmatpush1.msra.mxu0 0.0
      %443 = vmatprep.subr.mxu0 0.0
      %444 = vmatpush1.msra.mxu0 0.0
      %445 = vmatprep.subr.mxu0 0.0
      %446 = vmatpush1.msra.mxu0 0.0
      %447 = vmatprep.subr.mxu0 0.0
      %448 = vmatpush1.msra.mxu0 0.0
      %449 = vmatprep.subr.mxu0 0.0
      %450 = vmatpush1.msra.mxu0 0.0
      %451 = vmatprep.subr.mxu0 0.0
      %452 = vmatpush1.msra.mxu0 0.0
      %453 = vmatprep.subr.mxu0 0.0
      %454 = vmatpush1.msra.mxu0 0.0
      %455 = vmatprep.subr.mxu0 0.0
      %456 = vmatpush1.msra.mxu0 0.0
      %457 = vmatprep.subr.mxu0 0.0
      %458 = vmatpush1.msra.mxu0 0.0
      %459 = vmatprep.subr.mxu0 0.0
      %460 = vmatpush1.msra.mxu0 0.0
      %461 = vmatprep.subr.mxu0 0.0
      %462 = vmatpush1.msra.mxu0 0.0
      %463 = vmatprep.subr.mxu0 0.0
      %464 = vmatpush1.msra.mxu0 0.0
      %465 = vmatprep.subr.mxu0 0.0
      %466 = vmatpush1.msra.mxu0 0.0
      %467 = vmatprep.subr.mxu0 0.0
      %468 = vmatpush1.msra.mxu0 0.0
      %469 = vmatprep.subr.mxu0 0.0
      %470 = vmatpush1.msra.mxu0 0.0
      %471 = vmatprep.subr.mxu0 0.0
      %472 = vmatpush1.msra.mxu0 0.0
      %473 = vmatprep.subr.mxu0 0.0
      %474 = vmatpush1.msra.mxu0 0.0
      %475 = vmatprep.subr.mxu0 0.0
      %476 = vmatpush1.msra.mxu0 0.0
      %477 = vmatprep.subr.mxu0 0.0
      %478 = vmatpush1.msra.mxu0 0.0
      %479 = vmatprep.subr.mxu0 0.0
      %480 = vmatpush1.msra.mxu0 0.0
      %481 = vmatprep.subr.mxu0 0.0
      %482 = vmatpush1.msra.mxu0 0.0
      %483 = vmatprep.subr.mxu0 0.0
      %484 = vmatpush1.msra.mxu0 0.0
      %485 = vmatprep.subr.mxu0 0.0
      %486 = vmatpush1.msra.mxu0 0.0
      %487 = vmatprep.subr.mxu0 0.0
      %488 = vmatpush1.msra.mxu0 0.0
      %489 = vmatprep.subr.mxu0 0.0
      %490 = vmatpush1.msra.mxu0 0.0
      %491 = vmatprep.mubr.f32.mxu0 0.0
      %492 = vmatmul.mubr.f32.gmra.mrb[0].mxu0 %v425
      %v493 = vpop.f32.mrb[0].mxu0
      %v494 = vadd.f32 0.0, %v493
      %v495 = vpop.f32.mrb[0].mxu0
      %v496 = vadd.f32 0.0, %v495
      %497 = vdwg.mxu0
      %498 = vmatprep.subr.mxu0 0.0
      %499 = vmatpush1.msra.mxu0 %v410
      %500 = vmatprep.subr.mxu0 0.0
      %501 = vmatpush1.msra.mxu0 %v413
      %502 = vmatprep.subr.mxu0 0.0
      %503 = vmatpush1.msra.mxu0 %v416
      %504 = vmatprep.subr.mxu0 0.0
      %505 = vmatpush1.msra.mxu0 %v419
      %506 = vmatprep.subr.mxu0 0.0
      %507 = vmatpush1.msra.mxu0 %v422
      %508 = vmatprep.subr.mxu0 0.0
      %509 = vmatpush1.msra.mxu0 0.0
      %510 = vmatprep.subr.mxu0 0.0
      %511 = vmatpush1.msra.mxu0 0.0
      %512 = vmatprep.subr.mxu0 0.0
      %513 = vmatpush1.msra.mxu0 0.0
      %514 = vmatprep.subr.mxu0 0.0
      %515 = vmatpush1.msra.mxu0 0.0
      %516 = vmatprep.subr.mxu0 0.0
      %517 = vmatpush1.msra.mxu0 0.0
      %518 = vmatprep.subr.mxu0 0.0
      %519 = vmatpush1.msra.mxu0 0.0
      %520 = vmatprep.subr.mxu0 0.0
      %521 = vmatpush1.msra.mxu0 0.0
      %522 = vmatprep.subr.mxu0 0.0
      %523 = vmatpush1.msra.mxu0 0.0
      %524 = vmatprep.subr.mxu0 0.0
      %525 = vmatpush1.msra.mxu0 0.0
      %526 = vmatprep.subr.mxu0 0.0
      %527 = vmatpush1.msra.mxu0 0.0
      %528 = vmatprep.subr.mxu0 0.0
      %529 = vmatpush1.msra.mxu0 0.0
      %530 = vmatprep.subr.mxu0 0.0
      %531 = vmatpush1.msra.mxu0 0.0
      %532 = vmatprep.subr.mxu0 0.0
      %533 = vmatpush1.msra.mxu0 0.0
      %534 = vmatprep.subr.mxu0 0.0
      %535 = vmatpush1.msra.mxu0 0.0
      %536 = vmatprep.subr.mxu0 0.0
      %537 = vmatpush1.msra.mxu0 0.0
      %538 = vmatprep.subr.mxu0 0.0
      %539 = vmatpush1.msra.mxu0 0.0
      %540 = vmatprep.subr.mxu0 0.0
      %541 = vmatpush1.msra.mxu0 0.0
      %542 = vmatprep.subr.mxu0 0.0
      %543 = vmatpush1.msra.mxu0 0.0
      %544 = vmatprep.subr.mxu0 0.0
      %545 = vmatpush1.msra.mxu0 0.0
      %546 = vmatprep.subr.mxu0 0.0
      %547 = vmatpush1.msra.mxu0 0.0
      %548 = vmatprep.subr.mxu0 0.0
      %549 = vmatpush1.msra.mxu0 0.0
      %550 = vmatprep.subr.mxu0 0.0
      %551 = vmatpush1.msra.mxu0 0.0
      %552 = vmatprep.subr.mxu0 0.0
      %553 = vmatpush1.msra.mxu0 0.0
      %554 = vmatprep.subr.mxu0 0.0
      %555 = vmatpush1.msra.mxu0 0.0
      %556 = vmatprep.subr.mxu0 0.0
      %557 = vmatpush1.msra.mxu0 0.0
      %558 = vmatprep.subr.mxu0 0.0
      %559 = vmatpush1.msra.mxu0 0.0
      %560 = vmatprep.subr.mxu0 0.0
      %561 = vmatpush1.msra.mxu0 0.0
      %562 = vmatprep.mubr.f32.mxu0 0.0
      %563 = vmatmul.mubr.f32.gmra.mrb[0].mxu0 %v425
      %v564 = vpop.f32.mrb[0].mxu0
      %v565 = vadd.f32 0.0, %v564
      %v566 = vpop.f32.mrb[0].mxu0
      %567 = vdwg.mxu0
      %vm568 = vcmp.ge.s32.totalorder %v174, 17
      %vm569 = vcmp.ge.s32.totalorder %v175, 17
      %vm570 = vcmp.ge.s32.totalorder %v176, 17
      %vm571 = vcmp.lt.s32.totalorder %v174, 273
      %vm572 = vcmp.lt.s32.totalorder %v175, 273
      %vm573 = vcmp.lt.s32.totalorder %v176, 273
      %vm574 = vmand %vm568, %vm571
      %vm575 = vmand %vm569, %vm572
      %vm576 = vmand %vm570, %vm573
      %v577 = vsel %vm574, 1, 0
      %v578 = vsel %vm575, 1, 0
      %v579 = vsel %vm576, 1, 0
      %vm580 = vcmp.eq.s32.totalorder %v577, 1
      %vm581 = vcmp.eq.s32.totalorder %v578, 1
      %vm582 = vcmp.eq.s32.totalorder %v579, 1
      %v583 = vsel %vm580, %v494, 0.0
      %v584 = vsel %vm581, %v496, 0.0
      %v585 = vsel %vm582, %v565, 0.0
      %v586 = vadd.f32 %v583, %v584
      %vm587 = vcmask 277504
      %v588 = vsel %vm587, %v585, 0.0
      %v589 = vadd.f32 %v586, %v588
      %590 = vadd.xlane.f32.xlu0 %v589
      %v591 = vpop.xlane.xlu0 %590
      %v592 = vmul.f32 %v583, %v583
      %v593 = vmul.f32 %v584, %v584
      %v594 = vmul.f32 %v585, %v585
      %v595 = vadd.f32 %v592, %v593
      %v596 = vsel %vm587, %v594, 0.0
      %v597 = vadd.f32 %v595, %v596
      %598 = vadd.xlane.f32.xlu0 %v597
      %v599 = vpop.xlane.xlu0 %598
      %v600 = vmul.f32 %v591, 0.00390625
      %v601 = vmul.f32 %v599, 0.00390625
      %v602 = vmul.f32 %v600, %v600
      %v603 = vsub.f32 %v601, %v602
      %v604 = vmax.f32 %v603, 0.0
      %v605 = vsub.f32 %v583, %v600
      %v606 = vsub.f32 %v584, %v600
      %v607 = vsub.f32 %v585, %v600
      %v608 = vadd.f32 %v604, 1e-05
      %v609 = vrsqrt.pop %v608
      %v610 = vmul.f32 %v605, %v609
      %v611 = vmul.f32 %v606, %v609
      %v612 = vmul.f32 %v607, %v609
      %v613 = vmax.f32 %v610, 0.0
      %v614 = vmax.f32 %v611, 0.0
      %v615 = vmax.f32 %v612, 0.0
      %v616 = vmin.f32 %v613, 6.0
      %v617 = vmin.f32 %v614, 6.0
      %v618 = vmin.f32 %v615, 6.0
      %v619 = vsel %vm580, %v616, 0.0
      %v620 = vsel %vm581, %v617, 0.0
      %v621 = vsel %vm582, %v618, 0.0
      %v622 = vadd.s32 %v174, 32
      %v623 = vadd.s32 %v175, 32
      %vm624 = vcmp.lt.s32.totalorder %v622, 0
      %v625 = vsub.s32 0, %v622
      %v626 = vsel %vm624, %v625, %v622
      %v627 = vshrl.u32 %v626, 4
      %v628 = vand.u32 %v626, 15
      %v629 = vsub.s32 0, %v628
      %v630 = vsel %vm624, %v629, %v628
      %vm631 = vcmp.lt.s32.totalorder %v623, 0
      %v632 = vsub.s32 0, %v623
      %v633 = vsel %vm631, %v632, %v623
      %v634 = vshrl.u32 %v633, 4
      %v635 = vand.u32 %v633, 15
      %v636 = vsub.s32 0, %v635
      %v637 = vsel %vm631, %v636, %v635
      %vm638 = vcmp.ne.s32.totalorder %v630, 0
      %vm639 = vcmp.ne.s32.totalorder %v637, 0
      %vm640 = vcmp.lt.s32.totalorder %v630, 0
      %vm641 = vcmp.lt.s32.totalorder %v637, 0
      %vm642 = vmand %vm640, %vm638
      %vm643 = vmand %vm641, %vm639
      %v644 = vadd.s32 %v630, 16
      %v645 = vadd.s32 %v637, 16
      %v646 = vsel %vm642, %v644, %v630
      %v647 = vsel %vm643, %v645, %v637
      %vm648 = vcmp.ne.s32.totalorder %v646, 0
      %vm649 = vcmp.ne.s32.totalorder %v647, 0
      %vm650 = vcmp.ne.s32.totalorder %v646, 15
      %vm651 = vcmp.ne.s32.totalorder %v647, 15
      %v652 = vsel %vm648, 1, 0
      %v653 = vsel %vm649, 1, 0
      %vm654 = vcmp.eq.s32.totalorder %v652, 1
      %vm655 = vcmp.eq.s32.totalorder %v653, 1
      %v656 = vsel %vm654, %v619, 0.0
      %v657 = vsel %vm655, %v620, 0.0
      %658 = vst [vmem:[#allocation3] sm:$0xff] %v656
      %659 = vst [vmem:[#allocation3 + $0x8] sm:$0xff] %v657
      %663 = vrot.lane.b32.xlu0 %v619, 127
      %v664 = vpop.permute.xlu0 %663
      %665 = vrot.lane.b32.xlu0 %v620, 127
      %v666 = vpop.permute.xlu0 %665
      %667 = vrot.lane.b32.xlu0 %v621, 127
      %v668 = vpop.permute.xlu0 %667
      %v669 = vsel %vm250, %v664, %v666
      %v670 = vsel %vm250, %v666, %v668
      %673 = vst [vmem:[#allocation3 + $0x10] sm:$0xff] %v669
      %674 = vst [vmem:[#allocation3 + $0x18] sm:$0xff] %v670
      %v675 = vsel %vm650, 1, 0
      %v676 = vsel %vm651, 1, 0
      %vm677 = vcmp.eq.s32.totalorder %v675, 1
      %vm678 = vcmp.eq.s32.totalorder %v676, 1
      %679 = vrot.lane.b32.xlu0 %v619, 126
      %v680 = vpop.permute.xlu0 %679
      %681 = vrot.lane.b32.xlu0 %v620, 126
      %v682 = vpop.permute.xlu0 %681
      %683 = vrot.lane.b32.xlu0 %v621, 126
      %v684 = vpop.permute.xlu0 %683
      %v685 = vsel %vm272, %v680, %v682
      %v686 = vsel %vm272, %v682, %v684
      %v689 = vsel %vm677, %v685, 0.0
      %v690 = vsel %vm678, %v686, 0.0
      %691 = vst [vmem:[#allocation3 + $0x20] sm:$0xff] %v689
      %692 = vst [vmem:[#allocation3 + $0x28] sm:$0xff] %v690
      %693 = vrot.lane.b32.xlu0 %v619, 112
      %v694 = vpop.permute.xlu0 %693
      %695 = vrot.lane.b32.xlu0 %v620, 112
      %v696 = vpop.permute.xlu0 %695
      %697 = vrot.lane.b32.xlu0 %v621, 112
      %v698 = vpop.permute.xlu0 %697
      %v699 = vsel %vm290, %v694, %v696
      %v700 = vsel %vm290, %v696, %v698
      %v703 = vsel %vm654, %v699, 0.0
      %v704 = vsel %vm655, %v700, 0.0
      %705 = vst [vmem:[#allocation3 + $0x30] sm:$0xff] %v703
      %706 = vst [vmem:[#allocation3 + $0x38] sm:$0xff] %v704
      %707 = vrot.lane.b32.xlu0 %v619, 111
      %v708 = vpop.permute.xlu0 %707
      %709 = vrot.lane.b32.xlu0 %v620, 111
      %v710 = vpop.permute.xlu0 %709
      %711 = vrot.lane.b32.xlu0 %v621, 111
      %v712 = vpop.permute.xlu0 %711
      %v713 = vsel %vm317, %v708, %v710
      %v714 = vsel %vm317, %v710, %v712
      %717 = vst [vmem:[#allocation3 + $0x40] sm:$0xff] %v713
      %718 = vst [vmem:[#allocation3 + $0x48] sm:$0xff] %v714
      %719 = vrot.lane.b32.xlu0 %v619, 110
      %v720 = vpop.permute.xlu0 %719
      %721 = vrot.lane.b32.xlu0 %v620, 110
      %v722 = vpop.permute.xlu0 %721
      %723 = vrot.lane.b32.xlu0 %v621, 110
      %v724 = vpop.permute.xlu0 %723
      %v725 = vsel %vm332, %v720, %v722
      %v726 = vsel %vm332, %v722, %v724
      %v729 = vsel %vm677, %v725, 0.0
      %v730 = vsel %vm678, %v726, 0.0
      %731 = vst [vmem:[#allocation3 + $0x50] sm:$0xff] %v729
      %732 = vst [vmem:[#allocation3 + $0x58] sm:$0xff] %v730
      %733 = vrot.lane.b32.xlu0 %v619, 96
      %v734 = vpop.permute.xlu0 %733
      %735 = vrot.lane.b32.xlu0 %v620, 96
      %v736 = vpop.permute.xlu0 %735
      %737 = vrot.lane.b32.xlu0 %v621, 96
      %v738 = vpop.permute.xlu0 %737
      %v739 = vsel %vm359, %v734, %v736
      %v740 = vsel %vm359, %v736, %v738
      %v743 = vsel %vm654, %v739, 0.0
      %v744 = vsel %vm655, %v740, 0.0
      %745 = vst [vmem:[#allocation3 + $0x60] sm:$0xff] %v743
      %746 = vst [vmem:[#allocation3 + $0x68] sm:$0xff] %v744
      %747 = vrot.lane.b32.xlu0 %v619, 95
      %v748 = vpop.permute.xlu0 %747
      %749 = vrot.lane.b32.xlu0 %v620, 95
      %v750 = vpop.permute.xlu0 %749
      %751 = vrot.lane.b32.xlu0 %v621, 95
      %v752 = vpop.permute.xlu0 %751
      %v753 = vsel %vm377, %v748, %v750
      %v754 = vsel %vm377, %v750, %v752
      %757 = vst [vmem:[#allocation3 + $0x70] sm:$0xff] %v753
      %758 = vst [vmem:[#allocation3 + $0x78] sm:$0xff] %v754
      %759 = vrot.lane.b32.xlu0 %v619, 94
      %v760 = vpop.permute.xlu0 %759
      %761 = vrot.lane.b32.xlu0 %v620, 94
      %v762 = vpop.permute.xlu0 %761
      %763 = vrot.lane.b32.xlu0 %v621, 94
      %v764 = vpop.permute.xlu0 %763
      %v765 = vsel %vm392, %v760, %v762
      %v766 = vsel %vm392, %v762, %v764
      %v769 = vsel %vm677, %v765, 0.0
      %v770 = vsel %vm678, %v766, 0.0
      %771 = vst [vmem:[#allocation3 + $0x80] sm:$0xff] %v769
      %772 = vst [vmem:[#allocation3 + $0x88] sm:$0xff] %v770
      %v773 = vld [vmem:[%s2] sm:$0xff]
      %v774 = vld [vmem:[#allocation3] sm:$0xff]
      %v775 = vld [vmem:[#allocation3 + $0x8] sm:$0xff]
      %v776 = vld [vmem:[#allocation3 + $0x10] sm:$0xff]
      %v777 = vld [vmem:[#allocation3 + $0x18] sm:$0xff]
      %v778 = vld [vmem:[#allocation3 + $0x20] sm:$0xff]
      %v779 = vld [vmem:[#allocation3 + $0x28] sm:$0xff]
      %v780 = vld [vmem:[#allocation3 + $0x30] sm:$0xff]
      %v781 = vld [vmem:[#allocation3 + $0x38] sm:$0xff]
      %v782 = vld [vmem:[#allocation3 + $0x40] sm:$0xff]
      %v783 = vld [vmem:[#allocation3 + $0x48] sm:$0xff]
      %v784 = vld [vmem:[#allocation3 + $0x50] sm:$0xff]
      %v785 = vld [vmem:[#allocation3 + $0x58] sm:$0xff]
      %v786 = vld [vmem:[#allocation3 + $0x60] sm:$0xff]
      %v787 = vld [vmem:[#allocation3 + $0x68] sm:$0xff]
      %v788 = vld [vmem:[#allocation3 + $0x70] sm:$0xff]
      %v789 = vld [vmem:[#allocation3 + $0x78] sm:$0xff]
      %v790 = vld [vmem:[#allocation3 + $0x80] sm:$0xff]
      %v791 = vld [vmem:[#allocation3 + $0x88] sm:$0xff]
      %vm792 = vcmask 588800
      %v794 = vsel %vm792, %v773, 0
      %796 = vmatprep.subr.mxu0 %v775
      %797 = vmatpush1.msra.mxu0 %v774
      %798 = vmatprep.subr.mxu0 %v777
      %799 = vmatpush1.msra.mxu0 %v776
      %800 = vmatprep.subr.mxu0 %v779
      %801 = vmatpush1.msra.mxu0 %v778
      %802 = vmatprep.subr.mxu0 %v781
      %803 = vmatpush1.msra.mxu0 %v780
      %804 = vmatprep.subr.mxu0 %v783
      %805 = vmatpush1.msra.mxu0 %v782
      %806 = vmatprep.subr.mxu0 %v785
      %807 = vmatpush1.msra.mxu0 %v784
      %808 = vmatprep.subr.mxu0 %v787
      %809 = vmatpush1.msra.mxu0 %v786
      %810 = vmatprep.subr.mxu0 %v789
      %811 = vmatpush1.msra.mxu0 %v788
      %812 = vmatprep.subr.mxu0 %v791
      %813 = vmatpush1.msra.mxu0 %v790
      %814 = vmatprep.subr.mxu0 0.0
      %815 = vmatpush1.msra.mxu0 0.0
      %816 = vmatprep.subr.mxu0 0.0
      %817 = vmatpush1.msra.mxu0 0.0
      %818 = vmatprep.subr.mxu0 0.0
      %819 = vmatpush1.msra.mxu0 0.0
      %820 = vmatprep.subr.mxu0 0.0
      %821 = vmatpush1.msra.mxu0 0.0
      %822 = vmatprep.subr.mxu0 0.0
      %823 = vmatpush1.msra.mxu0 0.0
      %824 = vmatprep.subr.mxu0 0.0
      %825 = vmatpush1.msra.mxu0 0.0
      %826 = vmatprep.subr.mxu0 0.0
      %827 = vmatpush1.msra.mxu0 0.0
      %828 = vmatprep.subr.mxu0 0.0
      %829 = vmatpush1.msra.mxu0 0.0
      %830 = vmatprep.subr.mxu0 0.0
      %831 = vmatpush1.msra.mxu0 0.0
      %832 = vmatprep.subr.mxu0 0.0
      %833 = vmatpush1.msra.mxu0 0.0
      %834 = vmatprep.subr.mxu0 0.0
      %835 = vmatpush1.msra.mxu0 0.0
      %836 = vmatprep.subr.mxu0 0.0
      %837 = vmatpush1.msra.mxu0 0.0
      %838 = vmatprep.subr.mxu0 0.0
      %839 = vmatpush1.msra.mxu0 0.0
      %840 = vmatprep.subr.mxu0 0.0
      %841 = vmatpush1.msra.mxu0 0.0
      %842 = vmatprep.subr.mxu0 0.0
      %843 = vmatpush1.msra.mxu0 0.0
      %844 = vmatprep.subr.mxu0 0.0
      %845 = vmatpush1.msra.mxu0 0.0
      %846 = vmatprep.subr.mxu0 0.0
      %847 = vmatpush1.msra.mxu0 0.0
      %848 = vmatprep.subr.mxu0 0.0
      %849 = vmatpush1.msra.mxu0 0.0
      %850 = vmatprep.subr.mxu0 0.0
      %851 = vmatpush1.msra.mxu0 0.0
      %852 = vmatprep.subr.mxu0 0.0
      %853 = vmatpush1.msra.mxu0 0.0
      %854 = vmatprep.subr.mxu0 0.0
      %855 = vmatpush1.msra.mxu0 0.0
      %856 = vmatprep.subr.mxu0 0.0
      %857 = vmatpush1.msra.mxu0 0.0
      %858 = vmatprep.subr.mxu0 0.0
      %859 = vmatpush1.msra.mxu0 0.0
      %860 = vmatprep.mubr.f32.mxu0 0.0
      %861 = vmatmul.mubr.f32.gmra.mrb[0].mxu0 %v794
      %v862 = vpop.f32.mrb[0].mxu0
      %v863 = vadd.f32 0.0, %v862
      %v864 = vpop.f32.mrb[0].mxu0
      %v865 = vadd.f32 0.0, %v864
      %866 = vdwg.mxu0
      %v867 = vadd.f32 %v863, %v865
      %868 = vadd.xlane.f32.xlu0 %v867
      %v869 = vpop.xlane.xlu0 %868
      %v870 = vmul.f32 %v863, %v863
      %v871 = vmul.f32 %v865, %v865
      %v872 = vadd.f32 %v870, %v871
      %873 = vadd.xlane.f32.xlu0 %v872
      %v874 = vpop.xlane.xlu0 %873
      %v875 = vmul.f32 %v869, 0.00390625
      %v876 = vmul.f32 %v874, 0.00390625
      %v877 = vmul.f32 %v875, %v875
      %v878 = vsub.f32 %v876, %v877
      %v879 = vmax.f32 %v878, 0.0
      %v880 = vsub.f32 %v863, %v875
      %v881 = vsub.f32 %v865, %v875
      %v882 = vadd.f32 %v879, 1e-05
      %v883 = vrsqrt.pop %v882
      %v884 = vmul.f32 %v880, %v883
      %v885 = vmul.f32 %v881, %v883
      %v886 = vmax.f32 %v884, 0.0
      %v887 = vmax.f32 %v885, 0.0
      %v888 = vmin.f32 %v886, 6.0
      %v889 = vmin.f32 %v887, 6.0
      %890 = vst [vmem:[%s170] sm:$0xff] %v888
      %891 = vst [vmem:[%s170 + $0x8] sm:$0xff] %v889
      %p892 = scmp.lt.s32.totalorder %s14, 1
      %s893 = scalar_select %p892, %s14, 1
      %s894 = smul.addr %s893, 2
      %s895 = smul.addr %s894, 8
      %s896 = scalar_lea.vmem %s3, %s895
      // Predicated region
      $region33: #{double_cbr.1} parent=31 // pred_check
        %p897 = pneg %p100
      $region34: #{double_cbr.1} parent=31 // pred_check_branch
        %899 = sbr.rel (%p897) target = $region36
      $region35: #{double_cbr.1} parent=31 // pred_region
        _
      $region36: #{double_cbr.1} parent=31 // pred_fallthru
        _
    $region32: #{double_cbr.1} parent=5 // pred_fallthru
      _
    %p900 = scmp.le.s32.totalorder 2, %s9
    // Predicated region
    $region37: #{double_cbr.1} parent=5 // pred_check
      %p901 = pneg %p900
    $region38: #{double_cbr.1} parent=5 // pred_check_branch
      %903 = sbr.rel (%p901) target = $region40
    $region39: #{double_cbr.1} parent=5 // pred_region
      %s904 = ssub.s32 %s9, 2
      // Predicated region
      $region41: #{double_cbr.1} parent=39 // pred_check
        %p905 = pneg %p106
      $region42: #{double_cbr.1} parent=39 // pred_check_branch
        %907 = sbr.rel (%p905) target = $region44
      $region43: #{double_cbr.1} parent=39 // pred_region
        %p908 = scmp.lt.s32.totalorder %s15, 1
        %s909 = scalar_select %p908, %s15, 1
        %s910 = smul.addr %s909, 2
        %s911 = smul.addr %s910, 8
        %s912 = scalar_lea.vmem %s3, %s911
      $region44: #{double_cbr.1} parent=39 // pred_fallthru
        _
    $region40: #{double_cbr.1} parent=5 // pred_fallthru
      _
  $region6: #{double_cbr.1} parent=0 // loop_footer
    %s13 = sadd.s32 1, %s9
  $region7: #{double_cbr.1} parent=0 // loop_footer_branch
    %8 = sbr.rel target = $region3
  $region8: #{double_cbr.1} parent=0 // loop_exit
    _

</llo_original>
